<compile_context>
chip_gen: v7x
topology: tpu7x:2x2x1
jax: 0.10.0
libtpu: 0.0.40
codegen_flags: <defaults>
</compile_context>

<pallas_src>
import numpy as np
import jax
import jax.numpy as jnp
from jax import lax
from jax.experimental import pallas as pl
from jax.experimental.pallas import tpu as pltpu


_BLK = 128   # time samples per block (lane width)
_P = 8       # state vector padded to 8 lanes (filter order 5 -> 8)


# ----------------------------------------------------------------------------
# Host-side filter design (glue): Butterworth lowpass + lfilter_zi, no scipy.
# ----------------------------------------------------------------------------
def _butter_lowpass(order, cutoff_freq, fs):
    """Digital Butterworth lowpass (matches scipy.signal.butter(order, Wn))."""
    Wn = cutoff_freq / (0.5 * fs)
    # analog prototype poles (scipy.signal.buttap)
    m = np.arange(-order + 1, order, 2)
    p = -np.exp(1j * np.pi * m / (2.0 * order))
    k = 1.0
    # prewarp + lowpass-to-lowpass
    fs_d = 2.0
    warped = 2.0 * fs_d * np.tan(np.pi * Wn / fs_d)
    p = warped * p
    k = k * warped ** order
    # bilinear transform
    fs2 = 2.0 * fs_d
    pz = (fs2 + p) / (fs2 - p)
    zz = -np.ones(order)
    kz = k * np.real(1.0 / np.prod(fs2 - p))
    b = kz * np.real(np.poly(zz))
    a = np.real(np.poly(pz))
    return b, a


def _lfilter_zi(b, a):
    """Initial filter state for step response == 1 (scipy.signal.lfilter_zi)."""
    n = len(a)
    a = a / a[0]
    comp = np.zeros((n - 1, n - 1))
    comp[0, :] = -a[1:]
    comp[np.arange(1, n - 1), np.arange(0, n - 2)] = 1.0
    iminus_a = np.eye(n - 1) - comp.T
    rhs = b[1:] - a[1:] * b[0]
    return np.linalg.solve(iminus_a, rhs)


def _block_filter_matrices(b, a, n_blk=_BLK, p=_P):
    """Block-lifted DF2T state-space operators for an n_blk-sample chunk.

    DF2T step:  z' = A z + B x,   y = C z + D x  (state padded to size p).
    Forward block (time ascending):   y[k] = C A^k z + sum_{j<k} C A^{k-1-j} B x[j] + D x[k]
                                      z'   = A^N z + sum_j A^{N-1-j} B x[j]
    Backward block (time descending): y[k] = C A^{N-1-k} z + sum_{j>k} C A^{j-k-1} B x[j] + D x[k]
                                      z'   = A^N z + sum_j A^j B x[j]
    Returned matrices are transposed for the in-kernel [batch, time] layout.
    """
    b = np.asarray(b, np.float64)
    a = np.asarray(a, np.float64)
    b = b / a[0]
    a = a / a[0]
    order = len(a) - 1
    assert order < p

    A = np.zeros((p, p))
    A[:order, 0] = -a[1:]
    for i in range(order - 1):
        A[i, i + 1] = 1.0
    Bv = np.zeros(p)
    Bv[:order] = b[1:] - a[1:] * b[0]
    Cv = np.zeros(p)
    Cv[0] = 1.0
    D = b[0]

    Ak = np.zeros((n_blk + 1, p, p))
    Ak[0] = np.eye(p)
    for m in range(1, n_blk + 1):
        Ak[m] = Ak[m - 1] @ A
    CA = np.einsum('i,mij->mj', Cv, Ak[:n_blk])     # CA[m]  = C A^m     [N, p]
    AkB = np.einsum('mij,j->mi', Ak[:n_blk], Bv)    # AkB[m] = A^m B     [N, p]
    CAB = CA @ Bv                                    # CAB[m] = C A^m B   [N]

    L_f = np.zeros((n_blk, n_blk))
    for k in range(n_blk):
        L_f[k, k] = D
        if k > 0:
            L_f[k, :k] = CAB[:k][::-1]              # L_f[k, j] = C A^{k-1-j} B
    S_f = CA                                         # S_f[k] = C A^k
    G_f = AkB[::-1].copy()                           # G_f[j] = A^{N-1-j} B
    AN = Ak[n_blk]

    L_b = L_f[::-1, ::-1].copy()                     # reverse-time versions
    S_b = S_f[::-1].copy()
    G_b = AkB.copy()                                 # G_b[j] = A^j B

    f32 = lambda m: np.ascontiguousarray(m, dtype=np.float32)
    return dict(ltf=f32(L_f.T), stf=f32(S_f.T), gf=f32(G_f),
                ltb=f32(L_b.T), stb=f32(S_b.T), gb=f32(G_b),
                ant=f32(AN.T))


# ----------------------------------------------------------------------------
# Pallas kernel: forward + backward block-lifted IIR over one batch tile.
# ----------------------------------------------------------------------------
def _filtfilt_block_kernel(x_ref, ltf_ref, stf_ref, gf_ref,
                           ltb_ref, stb_ref, gb_ref, ant_ref, zi_ref,
                           o_ref):
    """x_ref / o_ref: [n_blocks, b_tile, 128] f32; matrices are small constants."""
    nb = x_ref.shape[0]
    n = x_ref.shape[2]
    f32 = jnp.float32

    # hoist all constant operands out of the loops
    ltf = ltf_ref[...]
    stf = stf_ref[...]
    gf = gf_ref[...]
    ltb = ltb_ref[...]
    stb = stb_ref[...]
    gb = gb_ref[...]
    ant = ant_ref[...]
    zi = zi_ref[...]                                   # [1, P]

    # ---- forward pass: y1 = lfilter(b, a, x, zi = zi * x[0]) ----
    x_first = x_ref[0]
    z0 = x_first[:, 0:1] * zi                          # [b_tile, P]

    def fwd(k, z):
        xb = x_ref[k]                                  # [b_tile, N]
        o_ref[k] = (jnp.dot(xb, ltf, preferred_element_type=f32)
                    + jnp.dot(z, stf, preferred_element_type=f32))
        return (jnp.dot(z, ant, preferred_element_type=f32)
                + jnp.dot(xb, gf, preferred_element_type=f32))

    lax.fori_loop(0, nb, fwd, z0)

    # ---- backward pass (reverse time), in place over the forward result ----
    y_last = o_ref[nb - 1]
    zb0 = y_last[:, n - 1:n] * zi                      # zi * y1[-1]

    def bwd(i, z):
        k = nb - 1 - i
        yb = o_ref[k]
        o_ref[k] = (jnp.dot(yb, ltb, preferred_element_type=f32)
                    + jnp.dot(z, stb, preferred_element_type=f32))
        return (jnp.dot(z, ant, preferred_element_type=f32)
                + jnp.dot(yb, gb, preferred_element_type=f32))

    lax.fori_loop(0, nb, bwd, zb0)


# ----------------------------------------------------------------------------
# Wrapper == GREEN.forward
# ----------------------------------------------------------------------------
def green_forward(x, fs=30.0, cutoff_freq=3.3, order=5):
    """x: [batch, length] float32 -> zero-phase lowpass filtered, same shape."""
    x = jnp.asarray(x, jnp.float32)
    batch, length = x.shape

    b, a = _butter_lowpass(order, cutoff_freq, fs)
    zi = _lfilter_zi(b, a)
    padlen = 3 * max(len(a), len(b))                   # scipy filtfilt default
    if length <= padlen:
        raise ValueError("signal too short for filtfilt padding")

    n = _BLK
    t_ext = length + 2 * padlen
    nb = -(-t_ext // n)                                # ceil div
    t_pad = nb * n
    pad_e = t_pad - t_ext                              # constant front padding

    mats = _block_filter_matrices(b, a, n, _P)
    zi_arr = np.zeros((1, _P), np.float32)
    zi_arr[0, :order] = zi

    # odd extension (scipy filtfilt padtype='odd') + constant front padding.
    # Front padding with x_ext[0] is exact: zi is the steady state for a
    # constant input, so the state entering the real data is zi * x_ext[0].
    left = 2.0 * x[:, :1] - x[:, 1:padlen + 1][:, ::-1]
    right = 2.0 * x[:, -1:] - x[:, -padlen - 1:-1][:, ::-1]
    parts = []
    if pad_e:
        parts.append(jnp.broadcast_to(left[:, :1], (batch, pad_e)))
    parts += [left, x, right]
    x_ext = jnp.concatenate(parts, axis=1)             # [B, t_pad]

    # batch tiling: pad rows (zeros -> finite results) to a multiple of b_tile
    bp8 = ((batch + 7) // 8) * 8
    b_tile = 8
    for cand in (128, 64, 32, 16, 8):
        if cand <= bp8:
            b_tile = cand
            break
    # keep (double-buffered) in+out tiles comfortably inside VMEM on all gens
    budget = 40 * 1024 * 1024
    while b_tile > 8 and 4 * nb * b_tile * n * 4 > budget:
        b_tile //= 2
    bp = -(-bp8 // b_tile) * b_tile

    x_in = jnp.zeros((bp, t_pad), jnp.float32).at[:batch, :].set(x_ext)
    x_in = x_in.reshape(bp, nb, n).transpose(1, 0, 2)  # [nb, bp, n]

    tile_bytes = nb * b_tile * n * 4
    mat_bytes = sum(m.nbytes for m in mats.values()) + zi_arr.nbytes
    vmem_limit = int(min(64 * 1024 * 1024,
                         max(32 * 1024 * 1024,
                             4 * tile_bytes + 2 * mat_bytes + (4 << 20))))

    full = lambda i: (0, 0)
    out = pl.pallas_call(
        _filtfilt_block_kernel,
        out_shape=jax.ShapeDtypeStruct((nb, bp, n), jnp.float32),
        grid=(bp // b_tile,),
        in_specs=[
            pl.BlockSpec((nb, b_tile, n), lambda i: (0, i, 0)),
            pl.BlockSpec(mats['ltf'].shape, full),
            pl.BlockSpec(mats['stf'].shape, full),
            pl.BlockSpec(mats['gf'].shape, full),
            pl.BlockSpec(mats['ltb'].shape, full),
            pl.BlockSpec(mats['stb'].shape, full),
            pl.BlockSpec(mats['gb'].shape, full),
            pl.BlockSpec(mats['ant'].shape, full),
            pl.BlockSpec(zi_arr.shape, full),
        ],
        out_specs=pl.BlockSpec((nb, b_tile, n), lambda i: (0, i, 0)),
        compiler_params=pltpu.CompilerParams(
            dimension_semantics=("parallel",),
            vmem_limit_bytes=vmem_limit),
    )(x_in,
      jnp.asarray(mats['ltf']), jnp.asarray(mats['stf']), jnp.asarray(mats['gf']),
      jnp.asarray(mats['ltb']), jnp.asarray(mats['stb']), jnp.asarray(mats['gb']),
      jnp.asarray(mats['ant']), jnp.asarray(zi_arr))

    y = out.transpose(1, 0, 2).reshape(bp, t_pad)
    start = pad_e + padlen
    return y[:batch, start:start + length]


# ----------------------------------------------------------------------------
# Sequential float64 reference (scipy filtfilt semantics) for validation.
# ----------------------------------------------------------------------------
def _filtfilt_ref_np(x, b, a, zi, padlen):
    b = np.asarray(b, np.float64)
    a = np.asarray(a, np.float64)
    zi = np.asarray(zi, np.float64)
    order = len(a) - 1

    def lfilter(sig, z0):
        z = z0.copy()
        y = np.zeros_like(sig)
        for idx in range(sig.shape[0]):
            xn = sig[idx]
            yn = b[0] * xn + z[0]
            for i in range(order - 1):
                z[i] = b[i + 1] * xn + z[i + 1] - a[i + 1] * yn
            z[order - 1] = b[order] * xn - a[order] * yn
            y[idx] = yn
        return y

    out = np.zeros_like(x)
    for r in range(x.shape[0]):
        s = x[r]
        ext = np.concatenate([2.0 * s[0] - s[1:padlen + 1][::-1], s,
                              2.0 * s[-1] - s[-padlen - 1:-1][::-1]])
        y1 = lfilter(ext, zi * ext[0])
        y2 = lfilter(y1[::-1], zi * y1[-1])[::-1]
        out[r] = y2[padlen:padlen + s.shape[0]]
    return out


# TODO(synk): the PyTorch module's config-file loading (load_config.get_config)
# and the x.data.cpu().numpy() host round-trip have no kernel equivalent;
# fs/cutoff are fixed in-script.

if __name__ == "__main__":
    key = jax.random.PRNGKey(0)
    batch, length = 2, 128
    x = jax.random.normal(key, (batch, length), dtype=jnp.float32)

    y = green_forward(x, fs=30.0, cutoff_freq=3.3, order=5)
    y = jax.block_until_ready(y)

    assert y.shape == (batch, length) and y.dtype == jnp.float32
    assert bool(jnp.all(jnp.isfinite(y)))

    # tolerance check against a sequential float64 filtfilt reference
    b, a = _butter_lowpass(5, 3.3, 30.0)
    zi = _lfilter_zi(b, a)
    padlen = 3 * max(len(a), len(b))
    ref = _filtfilt_ref_np(np.asarray(x, np.float64), b, a, zi, padlen)
    err = float(np.max(np.abs(np.asarray(y, np.float64) - ref)))
    assert err < 1e-1, f"numerical mismatch vs reference: max abs err {err}"

    print("KERNEL_OK")
</pallas_src>

<mosaic_0001>
module attributes {stable_mosaic.version = 11 : i64} {
  func.func @_filtfilt_block_kernel(%arg0: i32, %arg1: memref<2x8x128xf32, #tpu.memory_space<vmem>>, %arg2: memref<128x128xf32, #tpu.memory_space<vmem>>, %arg3: memref<8x128xf32, #tpu.memory_space<vmem>>, %arg4: memref<128x8xf32, #tpu.memory_space<vmem>>, %arg5: memref<128x128xf32, #tpu.memory_space<vmem>>, %arg6: memref<8x128xf32, #tpu.memory_space<vmem>>, %arg7: memref<128x8xf32, #tpu.memory_space<vmem>>, %arg8: memref<8x8xf32, #tpu.memory_space<vmem>>, %arg9: memref<1x8xf32, #tpu.memory_space<vmem>>, %arg10: memref<2x8x128xf32, #tpu.memory_space<vmem>>) attributes {dimension_semantics = [#tpu.dimension_semantics<parallel>], iteration_bounds = array<i64: 1>, scalar_prefetch = 0 : i64, scratch_operands = 0 : i64, tpu.core_type = #tpu.core_type<tc>, window_params = [{transform_indices = @transform_0, window_bounds = array<i64: 2, 8, 128>}, {pipeline_mode = #tpu.pipeline_mode<synchronous>, transform_indices = @transform_1, window_bounds = array<i64: 128, 128>}, {pipeline_mode = #tpu.pipeline_mode<synchronous>, transform_indices = @transform_2, window_bounds = array<i64: 8, 128>}, {pipeline_mode = #tpu.pipeline_mode<synchronous>, transform_indices = @transform_3, window_bounds = array<i64: 128, 8>}, {pipeline_mode = #tpu.pipeline_mode<synchronous>, transform_indices = @transform_4, window_bounds = array<i64: 128, 128>}, {pipeline_mode = #tpu.pipeline_mode<synchronous>, transform_indices = @transform_5, window_bounds = array<i64: 8, 128>}, {pipeline_mode = #tpu.pipeline_mode<synchronous>, transform_indices = @transform_6, window_bounds = array<i64: 128, 8>}, {pipeline_mode = #tpu.pipeline_mode<synchronous>, transform_indices = @transform_7, window_bounds = array<i64: 8, 8>}, {pipeline_mode = #tpu.pipeline_mode<synchronous>, transform_indices = @transform_8, window_bounds = array<i64: 1, 8>}, {transform_indices = @transform_9, window_bounds = array<i64: 2, 8, 128>}]} {
    %c0 = arith.constant 0 : index
    %c0_0 = arith.constant 0 : index
    %0 = vector.load %arg2[%c0, %c0_0] : memref<128x128xf32, #tpu.memory_space<vmem>>, vector<128x128xf32>
    %c0_1 = arith.constant 0 : index
    %c0_2 = arith.constant 0 : index
    %1 = vector.load %arg3[%c0_1, %c0_2] : memref<8x128xf32, #tpu.memory_space<vmem>>, vector<8x128xf32>
    %c0_3 = arith.constant 0 : index
    %c0_4 = arith.constant 0 : index
    %2 = vector.load %arg4[%c0_3, %c0_4] : memref<128x8xf32, #tpu.memory_space<vmem>>, vector<128x8xf32>
    %c0_5 = arith.constant 0 : index
    %c0_6 = arith.constant 0 : index
    %3 = vector.load %arg5[%c0_5, %c0_6] : memref<128x128xf32, #tpu.memory_space<vmem>>, vector<128x128xf32>
    %c0_7 = arith.constant 0 : index
    %c0_8 = arith.constant 0 : index
    %4 = vector.load %arg6[%c0_7, %c0_8] : memref<8x128xf32, #tpu.memory_space<vmem>>, vector<8x128xf32>
    %c0_9 = arith.constant 0 : index
    %c0_10 = arith.constant 0 : index
    %5 = vector.load %arg7[%c0_9, %c0_10] : memref<128x8xf32, #tpu.memory_space<vmem>>, vector<128x8xf32>
    %c0_11 = arith.constant 0 : index
    %c0_12 = arith.constant 0 : index
    %6 = vector.load %arg8[%c0_11, %c0_12] : memref<8x8xf32, #tpu.memory_space<vmem>>, vector<8x8xf32>
    %c0_13 = arith.constant 0 : index
    %c0_14 = arith.constant 0 : index
    %7 = vector.load %arg9[%c0_13, %c0_14] : memref<1x8xf32, #tpu.memory_space<vmem>>, vector<1x8xf32>
    %c0_15 = arith.constant 0 : index
    %c0_16 = arith.constant 0 : index
    %c0_17 = arith.constant 0 : index
    %8 = vector.load %arg1[%c0_15, %c0_16, %c0_17] : memref<2x8x128xf32, #tpu.memory_space<vmem>>, vector<1x8x128xf32>
    %9 = vector.shape_cast %8 : vector<1x8x128xf32> to vector<8x128xf32>
    %10 = vector.extract_strided_slice %9 {offsets = [0, 0], sizes = [8, 1], strides = [1, 1]} : vector<8x128xf32> to vector<8x1xf32>
    %11 = vector.broadcast %10 : vector<8x1xf32> to vector<8x8xf32>
    %12 = vector.broadcast %7 : vector<1x8xf32> to vector<8x8xf32>
    %13 = arith.mulf %11, %12 : vector<8x8xf32>
    %c0_i32 = arith.constant 0 : i32
    %c2_i32 = arith.constant 2 : i32
    %14 = arith.addi %c0_i32, %c2_i32 : i32
    %c1_i32 = arith.constant 1 : i32
    %15 = scf.for %arg11 = %c0_i32 to %14 step %c1_i32 iter_args(%arg12 = %13) -> (vector<8x8xf32>)  : i32 {
      %24 = arith.index_cast %arg11 : i32 to index
      %c0_25 = arith.constant 0 : index
      %c0_26 = arith.constant 0 : index
      %25 = vector.load %arg1[%24, %c0_25, %c0_26] : memref<2x8x128xf32, #tpu.memory_space<vmem>>, vector<1x8x128xf32>
      %26 = vector.shape_cast %25 : vector<1x8x128xf32> to vector<8x128xf32>
      %cst = arith.constant dense<0.000000e+00> : vector<8x128xf32>
      %27 = tpu.matmul %26, %0, %cst {dimension_numbers = #tpu.dot_dimension_numbers<[1], [0], [0], [1], [0, 0, 1, 1], [], []>} : vector<8x128xf32>, vector<128x128xf32>, vector<8x128xf32> -> vector<8x128xf32>
      %cst_27 = arith.constant dense<0.000000e+00> : vector<8x128xf32>
      %28 = tpu.matmul %arg12, %1, %cst_27 {dimension_numbers = #tpu.dot_dimension_numbers<[1], [0], [0], [1], [0, 0, 1, 1], [], []>} : vector<8x8xf32>, vector<8x128xf32>, vector<8x128xf32> -> vector<8x128xf32>
      %29 = arith.addf %27, %28 : vector<8x128xf32>
      %30 = arith.index_cast %arg11 : i32 to index
      %c0_28 = arith.constant 0 : index
      %c0_29 = arith.constant 0 : index
      %31 = vector.load %arg10[%30, %c0_28, %c0_29] : memref<2x8x128xf32, #tpu.memory_space<vmem>>, vector<1x8x128xf32>
      %32 = vector.shape_cast %31 : vector<1x8x128xf32> to vector<8x128xf32>
      %33 = vector.shape_cast %29 : vector<8x128xf32> to vector<1x8x128xf32>
      tpu.vector_store %arg10[%30, %c0_28, %c0_29], %33 {strides = array<i32>} : memref<2x8x128xf32, #tpu.memory_space<vmem>>, vector<1x8x128xf32>,
      %cst_30 = arith.constant dense<0.000000e+00> : vector<8x8xf32>
      %34 = tpu.matmul %arg12, %6, %cst_30 {dimension_numbers = #tpu.dot_dimension_numbers<[1], [0], [0], [1], [0, 0, 1, 1], [], []>} : vector<8x8xf32>, vector<8x8xf32>, vector<8x8xf32> -> vector<8x8xf32>
      %cst_31 = arith.constant dense<0.000000e+00> : vector<8x8xf32>
      %35 = tpu.matmul %26, %2, %cst_31 {dimension_numbers = #tpu.dot_dimension_numbers<[1], [0], [0], [1], [0, 0, 1, 1], [], []>} : vector<8x128xf32>, vector<128x8xf32>, vector<8x8xf32> -> vector<8x8xf32>
      %36 = arith.addf %34, %35 : vector<8x8xf32>
      scf.yield %36 : vector<8x8xf32>
    }
    %c2_i32_18 = arith.constant 2 : i32
    %c1 = arith.constant 1 : index
    %c0_19 = arith.constant 0 : index
    %c0_20 = arith.constant 0 : index
    %16 = vector.load %arg10[%c1, %c0_19, %c0_20] : memref<2x8x128xf32, #tpu.memory_space<vmem>>, vector<1x8x128xf32>
    %17 = vector.shape_cast %16 : vector<1x8x128xf32> to vector<8x128xf32>
    %18 = vector.extract_strided_slice %17 {offsets = [0, 127], sizes = [8, 1], strides = [1, 1]} : vector<8x128xf32> to vector<8x1xf32>
    %19 = vector.broadcast %18 : vector<8x1xf32> to vector<8x8xf32>
    %20 = vector.broadcast %7 : vector<1x8xf32> to vector<8x8xf32>
    %21 = arith.mulf %19, %20 : vector<8x8xf32>
    %c0_i32_21 = arith.constant 0 : i32
    %c2_i32_22 = arith.constant 2 : i32
    %22 = arith.addi %c0_i32_21, %c2_i32_22 : i32
    %c1_i32_23 = arith.constant 1 : i32
    %23 = scf.for %arg11 = %c0_i32_21 to %22 step %c1_i32_23 iter_args(%arg12 = %21) -> (vector<8x8xf32>)  : i32 {
      %c1_i32_25 = arith.constant 1 : i32
      %24 = arith.subi %c1_i32_25, %arg11 : i32
      %25 = arith.index_cast %24 : i32 to index
      %c0_26 = arith.constant 0 : index
      %c0_27 = arith.constant 0 : index
      %26 = vector.load %arg10[%25, %c0_26, %c0_27] : memref<2x8x128xf32, #tpu.memory_space<vmem>>, vector<1x8x128xf32>
      %27 = vector.shape_cast %26 : vector<1x8x128xf32> to vector<8x128xf32>
      %cst = arith.constant dense<0.000000e+00> : vector<8x128xf32>
      %28 = tpu.matmul %27, %3, %cst {dimension_numbers = #tpu.dot_dimension_numbers<[1], [0], [0], [1], [0, 0, 1, 1], [], []>} : vector<8x128xf32>, vector<128x128xf32>, vector<8x128xf32> -> vector<8x128xf32>
      %cst_28 = arith.constant dense<0.000000e+00> : vector<8x128xf32>
      %29 = tpu.matmul %arg12, %4, %cst_28 {dimension_numbers = #tpu.dot_dimension_numbers<[1], [0], [0], [1], [0, 0, 1, 1], [], []>} : vector<8x8xf32>, vector<8x128xf32>, vector<8x128xf32> -> vector<8x128xf32>
      %30 = arith.addf %28, %29 : vector<8x128xf32>
      %31 = arith.index_cast %24 : i32 to index
      %c0_29 = arith.constant 0 : index
      %c0_30 = arith.constant 0 : index
      %32 = vector.load %arg10[%31, %c0_29, %c0_30] : memref<2x8x128xf32, #tpu.memory_space<vmem>>, vector<1x8x128xf32>
      %33 = vector.shape_cast %32 : vector<1x8x128xf32> to vector<8x128xf32>
      %34 = vector.shape_cast %30 : vector<8x128xf32> to vector<1x8x128xf32>
      tpu.vector_store %arg10[%31, %c0_29, %c0_30], %34 {strides = array<i32>} : memref<2x8x128xf32, #tpu.memory_space<vmem>>, vector<1x8x128xf32>,
      %cst_31 = arith.constant dense<0.000000e+00> : vector<8x8xf32>
      %35 = tpu.matmul %arg12, %6, %cst_31 {dimension_numbers = #tpu.dot_dimension_numbers<[1], [0], [0], [1], [0, 0, 1, 1], [], []>} : vector<8x8xf32>, vector<8x8xf32>, vector<8x8xf32> -> vector<8x8xf32>
      %cst_32 = arith.constant dense<0.000000e+00> : vector<8x8xf32>
      %36 = tpu.matmul %27, %5, %cst_32 {dimension_numbers = #tpu.dot_dimension_numbers<[1], [0], [0], [1], [0, 0, 1, 1], [], []>} : vector<8x128xf32>, vector<128x8xf32>, vector<8x8xf32> -> vector<8x8xf32>
      %37 = arith.addf %35, %36 : vector<8x8xf32>
      scf.yield %37 : vector<8x8xf32>
    }
    %c2_i32_24 = arith.constant 2 : i32
    return
  }
  func.func @transform_0(%arg0: i32) -> (i32, i32, i32) {
    %c0_i32 = arith.constant 0 : i32
    %c0_i32_0 = arith.constant 0 : i32
    %c0_i32_1 = arith.constant 0 : i32
    return %c0_i32, %arg0, %c0_i32_0 : i32, i32, i32
  }
  func.func @transform_1(%arg0: i32) -> (i32, i32) {
    %c0_i32 = arith.constant 0 : i32
    %c0_i32_0 = arith.constant 0 : i32
    %c0_i32_1 = arith.constant 0 : i32
    return %c0_i32, %c0_i32_0 : i32, i32
  }
  func.func @transform_2(%arg0: i32) -> (i32, i32) {
    %c0_i32 = arith.constant 0 : i32
    %c0_i32_0 = arith.constant 0 : i32
    %c0_i32_1 = arith.constant 0 : i32
    return %c0_i32, %c0_i32_0 : i32, i32
  }
  func.func @transform_3(%arg0: i32) -> (i32, i32) {
    %c0_i32 = arith.constant 0 : i32
    %c0_i32_0 = arith.constant 0 : i32
    %c0_i32_1 = arith.constant 0 : i32
    return %c0_i32, %c0_i32_0 : i32, i32
  }
  func.func @transform_4(%arg0: i32) -> (i32, i32) {
    %c0_i32 = arith.constant 0 : i32
    %c0_i32_0 = arith.constant 0 : i32
    %c0_i32_1 = arith.constant 0 : i32
    return %c0_i32, %c0_i32_0 : i32, i32
  }
  func.func @transform_5(%arg0: i32) -> (i32, i32) {
    %c0_i32 = arith.constant 0 : i32
    %c0_i32_0 = arith.constant 0 : i32
    %c0_i32_1 = arith.constant 0 : i32
    return %c0_i32, %c0_i32_0 : i32, i32
  }
  func.func @transform_6(%arg0: i32) -> (i32, i32) {
    %c0_i32 = arith.constant 0 : i32
    %c0_i32_0 = arith.constant 0 : i32
    %c0_i32_1 = arith.constant 0 : i32
    return %c0_i32, %c0_i32_0 : i32, i32
  }
  func.func @transform_7(%arg0: i32) -> (i32, i32) {
    %c0_i32 = arith.constant 0 : i32
    %c0_i32_0 = arith.constant 0 : i32
    %c0_i32_1 = arith.constant 0 : i32
    return %c0_i32, %c0_i32_0 : i32, i32
  }
  func.func @transform_8(%arg0: i32) -> (i32, i32) {
    %c0_i32 = arith.constant 0 : i32
    %c0_i32_0 = arith.constant 0 : i32
    %c0_i32_1 = arith.constant 0 : i32
    return %c0_i32, %c0_i32_0 : i32, i32
  }
  func.func @transform_9(%arg0: i32) -> (i32, i32, i32) {
    %c0_i32 = arith.constant 0 : i32
    %c0_i32_0 = arith.constant 0 : i32
    %c0_i32_1 = arith.constant 0 : i32
    return %c0_i32, %arg0, %c0_i32_0 : i32, i32, i32
  }
}

</mosaic_0001>

<llo_original>
// kernel: tpu_custom_call.1
$region0: #{tpu_custom_call.1}
  #allocation0 [shape = 'u32[]', space=smem, size = 0x4, offset = 0x4, fixed_abs, tag = 'smem constant byte address 0x4 - core index']
  #allocation1 [shape = 'u32[144,128]{1,0:T(1,128)}', space=vmem, size = 0x12000, scoped, tag = 'internal scratch']
  %s0 = inlined_call_operand.vmem [shape: f32[2,8,128], index: 0, kind: input, shape index: {}]
  %s1 = inlined_call_operand.vmem [shape: f32[128,128], index: 1, kind: input, shape index: {}]
  %s2 = inlined_call_operand.hbm [shape: f32[8,128], index: 2, kind: input, shape index: {}]
  %s3 = inlined_call_operand.vmem [shape: f32[128,8], index: 3, kind: input, shape index: {}]
  %s4 = inlined_call_operand.vmem [shape: f32[128,128], index: 4, kind: input, shape index: {}]
  %s5 = inlined_call_operand.vmem [shape: f32[8,128], index: 5, kind: input, shape index: {}]
  %s6 = inlined_call_operand.vmem [shape: f32[128,8], index: 6, kind: input, shape index: {}]
  %s7 = inlined_call_operand.vmem [shape: f32[8,8], index: 7, kind: input, shape index: {}]
  %s8 = inlined_call_operand.vmem [shape: f32[1,8], index: 8, kind: input, shape index: {}]
  %s9 = inlined_call_operand.hbm [shape: f32[2,8,128], index: 9, kind: output, shape index: {}]
  %s10 = sld [smem:[#allocation0]]
  $region64: #{tpu_custom_call.1} parent=0
    _
  %s12 = ssub.s32 1, %s10
  %s13 = scalar_select 0, %s12, %s10
  $region1: #{tpu_custom_call.1} parent=0
    #allocation2 [shape = 'u8[4096]{0}', space=vmem, size = 0x1000, scoped, tag = 'input window, operand 2, single buffered']
    #allocation3 [shape = 's32[1]{0}', space=sflag, size = 0x4, scoped, tag = 'scoped memory for tpu_custom_call.1']
    #allocation4 [shape = 's32[1]{0}', space=sflag, size = 0x4, scoped, tag = 'scoped memory for tpu_custom_call.1']
    #allocation5 [shape = 'u8[8192]{0}', space=vmem, size = 0x2000, scoped, tag = 'output window, operand 0, single buffered']
    %14 = vsyncpa [#allocation3], 0
    %15 = vsyncpa [#allocation4], 0
    // Predicated region
    $region2: #{tpu_custom_call.1} parent=1 // pred_check
      _
    $region3: #{tpu_custom_call.1} parent=1 // pred_check_branch
      %17 = sbr.rel (0) target = $region5
    $region4: #{tpu_custom_call.1} parent=1 // pred_region
      _
    $region5: #{tpu_custom_call.1} parent=1 // pred_fallthru
      _
    // Predicated region
    $region6: #{tpu_custom_call.1} parent=1 // pred_check
      _
    $region7: #{tpu_custom_call.1} parent=1 // pred_check_branch
      %19 = sbr.rel (0) target = $region9
    $region8: #{tpu_custom_call.1} parent=1 // pred_region
      _
    $region9: #{tpu_custom_call.1} parent=1 // pred_fallthru
      _
    // Predicated region
    $region10: #{tpu_custom_call.1} parent=1 // pred_check
      _
    $region11: #{tpu_custom_call.1} parent=1 // pred_check_branch
      %21 = sbr.rel (0) target = $region13
    $region12: #{tpu_custom_call.1} parent=1 // pred_region
      %s23 = ssub.s32 128, 128
      %24 = vsyncadd [#allocation3], %s23
      %s26 = sshll.u32 [#allocation2], 4
      %s27 = int_to_ptr.vmem [resolvable:$true] %s26
      %29 = dma.hbm_to_vmem [thread:$0]  %s2, 128, %s27, [#allocation3]
    $region13: #{tpu_custom_call.1} parent=1 // pred_fallthru
      _
    // Predicated region
    $region14: #{tpu_custom_call.1} parent=1 // pred_check
      _
    $region15: #{tpu_custom_call.1} parent=1 // pred_check_branch
      %31 = sbr.rel (0) target = $region17
    $region16: #{tpu_custom_call.1} parent=1 // pred_region
      _
    $region17: #{tpu_custom_call.1} parent=1 // pred_fallthru
      _
    // Predicated region
    $region18: #{tpu_custom_call.1} parent=1 // pred_check
      _
    $region19: #{tpu_custom_call.1} parent=1 // pred_check_branch
      %33 = sbr.rel (0) target = $region21
    $region20: #{tpu_custom_call.1} parent=1 // pred_region
      _
    $region21: #{tpu_custom_call.1} parent=1 // pred_fallthru
      _
    // Predicated region
    $region22: #{tpu_custom_call.1} parent=1 // pred_check
      _
    $region23: #{tpu_custom_call.1} parent=1 // pred_check_branch
      %35 = sbr.rel (0) target = $region25
    $region24: #{tpu_custom_call.1} parent=1 // pred_region
      _
    $region25: #{tpu_custom_call.1} parent=1 // pred_fallthru
      _
    // Predicated region
    $region26: #{tpu_custom_call.1} parent=1 // pred_check
      _
    $region27: #{tpu_custom_call.1} parent=1 // pred_check_branch
      %37 = sbr.rel (0) target = $region29
    $region28: #{tpu_custom_call.1} parent=1 // pred_region
      _
    $region29: #{tpu_custom_call.1} parent=1 // pred_fallthru
      _
    // Predicated region
    $region30: #{tpu_custom_call.1} parent=1 // pred_check
      _
    $region31: #{tpu_custom_call.1} parent=1 // pred_check_branch
      %39 = sbr.rel (0) target = $region33
    $region32: #{tpu_custom_call.1} parent=1 // pred_region
      _
    $region33: #{tpu_custom_call.1} parent=1 // pred_fallthru
      _
    // Predicated region
    $region34: #{tpu_custom_call.1} parent=1 // pred_check
      _
    $region35: #{tpu_custom_call.1} parent=1 // pred_check_branch
      %41 = sbr.rel (0) target = $region37
    $region36: #{tpu_custom_call.1} parent=1 // pred_region
      _
    $region37: #{tpu_custom_call.1} parent=1 // pred_fallthru
      _
    // Predicated region
    $region38: #{tpu_custom_call.1} parent=1 // pred_check
      _
    $region39: #{tpu_custom_call.1} parent=1 // pred_check_branch
      %43 = sbr.rel (0) target = $region41
    $region40: #{tpu_custom_call.1} parent=1 // pred_region
      %44 = dma.done [#allocation3], 128
    $region41: #{tpu_custom_call.1} parent=1 // pred_fallthru
      _
    %v45 = vld [vmem:[%s1] sm:$0xff]
    %v46 = vld [vmem:[%s1 + $0x8] sm:$0xff]
    %v47 = vld [vmem:[%s1 + $0x10] sm:$0xff]
    %v48 = vld [vmem:[%s1 + $0x18] sm:$0xff]
    %v49 = vld [vmem:[%s1 + $0x20] sm:$0xff]
    %v50 = vld [vmem:[%s1 + $0x28] sm:$0xff]
    %v51 = vld [vmem:[%s1 + $0x30] sm:$0xff]
    %v52 = vld [vmem:[%s1 + $0x38] sm:$0xff]
    %v53 = vld [vmem:[%s1 + $0x40] sm:$0xff]
    %v54 = vld [vmem:[%s1 + $0x48] sm:$0xff]
    %v55 = vld [vmem:[%s1 + $0x50] sm:$0xff]
    %v56 = vld [vmem:[%s1 + $0x58] sm:$0xff]
    %v57 = vld [vmem:[%s1 + $0x60] sm:$0xff]
    %v58 = vld [vmem:[%s1 + $0x68] sm:$0xff]
    %v59 = vld [vmem:[%s1 + $0x70] sm:$0xff]
    %v60 = vld [vmem:[%s1 + $0x78] sm:$0xff]
    %v61 = vld [vmem:[#allocation2] sm:$0xff]
    %v62 = vld [vmem:[%s3] sm:$0xff]
    %v63 = vld [vmem:[%s3 + $0x8] sm:$0xff]
    %v64 = vld [vmem:[%s3 + $0x10] sm:$0xff]
    %v65 = vld [vmem:[%s3 + $0x18] sm:$0xff]
    %v66 = vld [vmem:[%s3 + $0x20] sm:$0xff]
    %v67 = vld [vmem:[%s3 + $0x28] sm:$0xff]
    %v68 = vld [vmem:[%s3 + $0x30] sm:$0xff]
    %v69 = vld [vmem:[%s3 + $0x38] sm:$0xff]
    %v70 = vld [vmem:[%s3 + $0x40] sm:$0xff]
    %v71 = vld [vmem:[%s3 + $0x48] sm:$0xff]
    %v72 = vld [vmem:[%s3 + $0x50] sm:$0xff]
    %v73 = vld [vmem:[%s3 + $0x58] sm:$0xff]
    %v74 = vld [vmem:[%s3 + $0x60] sm:$0xff]
    %v75 = vld [vmem:[%s3 + $0x68] sm:$0xff]
    %v76 = vld [vmem:[%s3 + $0x70] sm:$0xff]
    %v77 = vld [vmem:[%s3 + $0x78] sm:$0xff]
    %v78 = vld [vmem:[%s4] sm:$0xff]
    %v79 = vld [vmem:[%s4 + $0x8] sm:$0xff]
    %v80 = vld [vmem:[%s4 + $0x10] sm:$0xff]
    %v81 = vld [vmem:[%s4 + $0x18] sm:$0xff]
    %v82 = vld [vmem:[%s4 + $0x20] sm:$0xff]
    %v83 = vld [vmem:[%s4 + $0x28] sm:$0xff]
    %v84 = vld [vmem:[%s4 + $0x30] sm:$0xff]
    %v85 = vld [vmem:[%s4 + $0x38] sm:$0xff]
    %v86 = vld [vmem:[%s4 + $0x40] sm:$0xff]
    %v87 = vld [vmem:[%s4 + $0x48] sm:$0xff]
    %v88 = vld [vmem:[%s4 + $0x50] sm:$0xff]
    %v89 = vld [vmem:[%s4 + $0x58] sm:$0xff]
    %v90 = vld [vmem:[%s4 + $0x60] sm:$0xff]
    %v91 = vld [vmem:[%s4 + $0x68] sm:$0xff]
    %v92 = vld [vmem:[%s4 + $0x70] sm:$0xff]
    %v93 = vld [vmem:[%s4 + $0x78] sm:$0xff]
    %v94 = vld [vmem:[%s5] sm:$0xff]
    %v95 = vld [vmem:[%s6] sm:$0xff]
    %v96 = vld [vmem:[%s6 + $0x8] sm:$0xff]
    %v97 = vld [vmem:[%s6 + $0x10] sm:$0xff]
    %v98 = vld [vmem:[%s6 + $0x18] sm:$0xff]
    %v99 = vld [vmem:[%s6 + $0x20] sm:$0xff]
    %v100 = vld [vmem:[%s6 + $0x28] sm:$0xff]
    %v101 = vld [vmem:[%s6 + $0x30] sm:$0xff]
    %v102 = vld [vmem:[%s6 + $0x38] sm:$0xff]
    %v103 = vld [vmem:[%s6 + $0x40] sm:$0xff]
    %v104 = vld [vmem:[%s6 + $0x48] sm:$0xff]
    %v105 = vld [vmem:[%s6 + $0x50] sm:$0xff]
    %v106 = vld [vmem:[%s6 + $0x58] sm:$0xff]
    %v107 = vld [vmem:[%s6 + $0x60] sm:$0xff]
    %v108 = vld [vmem:[%s6 + $0x68] sm:$0xff]
    %v109 = vld [vmem:[%s6 + $0x70] sm:$0xff]
    %v110 = vld [vmem:[%s6 + $0x78] sm:$0xff]
    %v111 = vld [vmem:[%s7] sm:$0xff]
    %v112 = vld [vmem:[%s8] sm:$0x1]
    %v113 = vld [vmem:[%s0] sm:$0xff]
    %115 = vset.pattern.permute.xlu0 0
    %116 = vperm.xlu0 %115, %v113
    %v117 = vpop.permute.xlu0 %116
    %v120 = vlaneseq
    %v121 = vshrl.u32 %v120, 7
    %v122 = vsub.s32 0, %v121
    %v123 = vrot.slane %v112, %v122
    %v125 = vmul.f32 %v117, %v123
    loop: start=0, step=1, limit=2
    $region42: #{tpu_custom_call.1} parent=1 // loop_pre_header
      _
    $region43: #{tpu_custom_call.1} parent=1 // loop_header
      %s127 = sphi 0, %s131
      %p128 = scmp.ge.s32.totalorder %s127, 2
      %v132 = vphi %v125, %v419
    $region44: #{tpu_custom_call.1} parent=1 // loop_header_branch
      %130 = sbr.rel (%p128) target = $region48
    $region45: #{tpu_custom_call.1} parent=1 // loop_body
      %s133 = smul.u32 %s127, 8
      %s134 = scalar_lea.vmem %s0, %s133
      %v135 = vld [vmem:[%s134] sm:$0xff]
      %vm136 = vcmask 64512
      %v138 = vsel %vm136, %v132, 0
      %140 = vmatprep.subr.mxu0 0.0
      %141 = vmatpush1.msra.mxu0 %v61
      %142 = vmatprep.subr.mxu0 0.0
      %143 = vmatpush1.msra.mxu0 0.0
      %144 = vmatprep.subr.mxu0 0.0
      %145 = vmatpush1.msra.mxu0 0.0
      %146 = vmatprep.subr.mxu0 0.0
      %147 = vmatpush1.msra.mxu0 0.0
      %148 = vmatprep.subr.mxu0 0.0
      %149 = vmatpush1.msra.mxu0 0.0
      %150 = vmatprep.subr.mxu0 0.0
      %151 = vmatpush1.msra.mxu0 0.0
      %152 = vmatprep.subr.mxu0 0.0
      %153 = vmatpush1.msra.mxu0 0.0
      %154 = vmatprep.subr.mxu0 0.0
      %155 = vmatpush1.msra.mxu0 0.0
      %156 = vmatprep.subr.mxu0 0.0
      %157 = vmatpush1.msra.mxu0 0.0
      %158 = vmatprep.subr.mxu0 0.0
      %159 = vmatpush1.msra.mxu0 0.0
      %160 = vmatprep.subr.mxu0 0.0
      %161 = vmatpush1.msra.mxu0 0.0
      %162 = vmatprep.subr.mxu0 0.0
      %163 = vmatpush1.msra.mxu0 0.0
      %164 = vmatprep.subr.mxu0 0.0
      %165 = vmatpush1.msra.mxu0 0.0
      %166 = vmatprep.subr.mxu0 0.0
      %167 = vmatpush1.msra.mxu0 0.0
      %168 = vmatprep.subr.mxu0 0.0
      %169 = vmatpush1.msra.mxu0 0.0
      %170 = vmatprep.subr.mxu0 0.0
      %171 = vmatpush1.msra.mxu0 0.0
      %172 = vmatprep.subr.mxu0 0.0
      %173 = vmatpush1.msra.mxu0 0.0
      %174 = vmatprep.subr.mxu0 0.0
      %175 = vmatpush1.msra.mxu0 0.0
      %176 = vmatprep.subr.mxu0 0.0
      %177 = vmatpush1.msra.mxu0 0.0
      %178 = vmatprep.subr.mxu0 0.0
      %179 = vmatpush1.msra.mxu0 0.0
      %180 = vmatprep.subr.mxu0 0.0
      %181 = vmatpush1.msra.mxu0 0.0
      %182 = vmatprep.subr.mxu0 0.0
      %183 = vmatpush1.msra.mxu0 0.0
      %184 = vmatprep.subr.mxu0 0.0
      %185 = vmatpush1.msra.mxu0 0.0
      %186 = vmatprep.subr.mxu0 0.0
      %187 = vmatpush1.msra.mxu0 0.0
      %188 = vmatprep.subr.mxu0 0.0
      %189 = vmatpush1.msra.mxu0 0.0
      %190 = vmatprep.subr.mxu0 0.0
      %191 = vmatpush1.msra.mxu0 0.0
      %192 = vmatprep.subr.mxu0 0.0
      %193 = vmatpush1.msra.mxu0 0.0
      %194 = vmatprep.subr.mxu0 0.0
      %195 = vmatpush1.msra.mxu0 0.0
      %196 = vmatprep.subr.mxu0 0.0
      %197 = vmatpush1.msra.mxu0 0.0
      %198 = vmatprep.subr.mxu0 0.0
      %199 = vmatpush1.msra.mxu0 0.0
      %200 = vmatprep.subr.mxu0 0.0
      %201 = vmatpush1.msra.mxu0 0.0
      %202 = vmatprep.subr.mxu0 0.0
      %203 = vmatpush1.msra.mxu0 0.0
      %204 = vmatprep.mubr.f32.mxu0 0.0
      %205 = vmatmul.mubr.f32.gmra.mrb[0].mxu0 %v138
      %v206 = vpop.f32.mrb[0].mxu0
      %v207 = vadd.f32 0.0, %v206
      %v208 = vpop.f32.mrb[0].mxu0
      %209 = vdwg.mxu0
      %210 = vmatprep.subr.mxu0 0.0
      %211 = vmatpush1.msra.mxu0 %v45
      %212 = vmatprep.subr.mxu0 0.0
      %213 = vmatpush1.msra.mxu0 %v46
      %214 = vmatprep.subr.mxu0 0.0
      %215 = vmatpush1.msra.mxu0 %v47
      %216 = vmatprep.subr.mxu0 0.0
      %217 = vmatpush1.msra.mxu0 %v48
      %218 = vmatprep.subr.mxu0 0.0
      %219 = vmatpush1.msra.mxu0 %v49
      %220 = vmatprep.subr.mxu0 0.0
      %221 = vmatpush1.msra.mxu0 %v50
      %222 = vmatprep.subr.mxu0 0.0
      %223 = vmatpush1.msra.mxu0 %v51
      %224 = vmatprep.subr.mxu0 0.0
      %225 = vmatpush1.msra.mxu0 %v52
      %226 = vmatprep.subr.mxu0 0.0
      %227 = vmatpush1.msra.mxu0 %v53
      %228 = vmatprep.subr.mxu0 0.0
      %229 = vmatpush1.msra.mxu0 %v54
      %230 = vmatprep.subr.mxu0 0.0
      %231 = vmatpush1.msra.mxu0 %v55
      %232 = vmatprep.subr.mxu0 0.0
      %233 = vmatpush1.msra.mxu0 %v56
      %234 = vmatprep.subr.mxu0 0.0
      %235 = vmatpush1.msra.mxu0 %v57
      %236 = vmatprep.subr.mxu0 0.0
      %237 = vmatpush1.msra.mxu0 %v58
      %238 = vmatprep.subr.mxu0 0.0
      %239 = vmatpush1.msra.mxu0 %v59
      %240 = vmatprep.subr.mxu0 0.0
      %241 = vmatpush1.msra.mxu0 %v60
      %242 = vmatprep.subr.mxu0 0.0
      %243 = vmatpush1.msra.mxu0 0.0
      %244 = vmatprep.subr.mxu0 0.0
      %245 = vmatpush1.msra.mxu0 0.0
      %246 = vmatprep.subr.mxu0 0.0
      %247 = vmatpush1.msra.mxu0 0.0
      %248 = vmatprep.subr.mxu0 0.0
      %249 = vmatpush1.msra.mxu0 0.0
      %250 = vmatprep.subr.mxu0 0.0
      %251 = vmatpush1.msra.mxu0 0.0
      %252 = vmatprep.subr.mxu0 0.0
      %253 = vmatpush1.msra.mxu0 0.0
      %254 = vmatprep.subr.mxu0 0.0
      %255 = vmatpush1.msra.mxu0 0.0
      %256 = vmatprep.subr.mxu0 0.0
      %257 = vmatpush1.msra.mxu0 0.0
      %258 = vmatprep.subr.mxu0 0.0
      %259 = vmatpush1.msra.mxu0 0.0
      %260 = vmatprep.subr.mxu0 0.0
      %261 = vmatpush1.msra.mxu0 0.0
      %262 = vmatprep.subr.mxu0 0.0
      %263 = vmatpush1.msra.mxu0 0.0
      %264 = vmatprep.subr.mxu0 0.0
      %265 = vmatpush1.msra.mxu0 0.0
      %266 = vmatprep.subr.mxu0 0.0
      %267 = vmatpush1.msra.mxu0 0.0
      %268 = vmatprep.subr.mxu0 0.0
      %269 = vmatpush1.msra.mxu0 0.0
      %270 = vmatprep.subr.mxu0 0.0
      %271 = vmatpush1.msra.mxu0 0.0
      %272 = vmatprep.subr.mxu0 0.0
      %273 = vmatpush1.msra.mxu0 0.0
      %274 = vmatprep.mubr.f32.mxu0 0.0
      %275 = vmatmul.mubr.f32.gmra.mrb[0].mxu0 %v135
      %v276 = vpop.f32.mrb[0].mxu0
      %v277 = vadd.f32 %v207, %v276
      %v278 = vpop.f32.mrb[0].mxu0
      %279 = vdwg.mxu0
      %s280 = scalar_lea.vmem [#allocation5], %s133
      %281 = vst [vmem:[%s280] sm:$0xff] %v277
      %282 = vmatprep.subr.mxu0 0.0
      %283 = vmatpush1.msra.mxu0 %v62
      %284 = vmatprep.subr.mxu0 0.0
      %285 = vmatpush1.msra.mxu0 %v63
      %286 = vmatprep.subr.mxu0 0.0
      %287 = vmatpush1.msra.mxu0 %v64
      %288 = vmatprep.subr.mxu0 0.0
      %289 = vmatpush1.msra.mxu0 %v65
      %290 = vmatprep.subr.mxu0 0.0
      %291 = vmatpush1.msra.mxu0 %v66
      %292 = vmatprep.subr.mxu0 0.0
      %293 = vmatpush1.msra.mxu0 %v67
      %294 = vmatprep.subr.mxu0 0.0
      %295 = vmatpush1.msra.mxu0 %v68
      %296 = vmatprep.subr.mxu0 0.0
      %297 = vmatpush1.msra.mxu0 %v69
      %298 = vmatprep.subr.mxu0 0.0
      %299 = vmatpush1.msra.mxu0 %v70
      %300 = vmatprep.subr.mxu0 0.0
      %301 = vmatpush1.msra.mxu0 %v71
      %302 = vmatprep.subr.mxu0 0.0
      %303 = vmatpush1.msra.mxu0 %v72
      %304 = vmatprep.subr.mxu0 0.0
      %305 = vmatpush1.msra.mxu0 %v73
      %306 = vmatprep.subr.mxu0 0.0
      %307 = vmatpush1.msra.mxu0 %v74
      %308 = vmatprep.subr.mxu0 0.0
      %309 = vmatpush1.msra.mxu0 %v75
      %310 = vmatprep.subr.mxu0 0.0
      %311 = vmatpush1.msra.mxu0 %v76
      %312 = vmatprep.subr.mxu0 0.0
      %313 = vmatpush1.msra.mxu0 %v77
      %314 = vmatprep.subr.mxu0 0.0
      %315 = vmatpush1.msra.mxu0 0.0
      %316 = vmatprep.subr.mxu0 0.0
      %317 = vmatpush1.msra.mxu0 0.0
      %318 = vmatprep.subr.mxu0 0.0
      %319 = vmatpush1.msra.mxu0 0.0
      %320 = vmatprep.subr.mxu0 0.0
      %321 = vmatpush1.msra.mxu0 0.0
      %322 = vmatprep.subr.mxu0 0.0
      %323 = vmatpush1.msra.mxu0 0.0
      %324 = vmatprep.subr.mxu0 0.0
      %325 = vmatpush1.msra.mxu0 0.0
      %326 = vmatprep.subr.mxu0 0.0
      %327 = vmatpush1.msra.mxu0 0.0
      %328 = vmatprep.subr.mxu0 0.0
      %329 = vmatpush1.msra.mxu0 0.0
      %330 = vmatprep.subr.mxu0 0.0
      %331 = vmatpush1.msra.mxu0 0.0
      %332 = vmatprep.subr.mxu0 0.0
      %333 = vmatpush1.msra.mxu0 0.0
      %334 = vmatprep.subr.mxu0 0.0
      %335 = vmatpush1.msra.mxu0 0.0
      %336 = vmatprep.subr.mxu0 0.0
      %337 = vmatpush1.msra.mxu0 0.0
      %338 = vmatprep.subr.mxu0 0.0
      %339 = vmatpush1.msra.mxu0 0.0
      %340 = vmatprep.subr.mxu0 0.0
      %341 = vmatpush1.msra.mxu0 0.0
      %342 = vmatprep.subr.mxu0 0.0
      %343 = vmatpush1.msra.mxu0 0.0
      %344 = vmatprep.subr.mxu0 0.0
      %345 = vmatpush1.msra.mxu0 0.0
      %346 = vmatprep.mubr.f32.mxu0 0.0
      %347 = vmatmul.mubr.f32.gmra.mrb[0].mxu0 %v135
      %v348 = vpop.f32.mrb[0].mxu0
      %v349 = vadd.f32 0.0, %v348
      %v350 = vpop.f32.mrb[0].mxu0
      %351 = vdwg.mxu0
      %352 = vmatprep.subr.mxu0 0.0
      %353 = vmatpush1.msra.mxu0 %v111
      %354 = vmatprep.subr.mxu0 0.0
      %355 = vmatpush1.msra.mxu0 0.0
      %356 = vmatprep.subr.mxu0 0.0
      %357 = vmatpush1.msra.mxu0 0.0
      %358 = vmatprep.subr.mxu0 0.0
      %359 = vmatpush1.msra.mxu0 0.0
      %360 = vmatprep.subr.mxu0 0.0
      %361 = vmatpush1.msra.mxu0 0.0
      %362 = vmatprep.subr.mxu0 0.0
      %363 = vmatpush1.msra.mxu0 0.0
      %364 = vmatprep.subr.mxu0 0.0
      %365 = vmatpush1.msra.mxu0 0.0
      %366 = vmatprep.subr.mxu0 0.0
      %367 = vmatpush1.msra.mxu0 0.0
      %368 = vmatprep.subr.mxu0 0.0
      %369 = vmatpush1.msra.mxu0 0.0
      %370 = vmatprep.subr.mxu0 0.0
      %371 = vmatpush1.msra.mxu0 0.0
      %372 = vmatprep.subr.mxu0 0.0
      %373 = vmatpush1.msra.mxu0 0.0
      %374 = vmatprep.subr.mxu0 0.0
      %375 = vmatpush1.msra.mxu0 0.0
      %376 = vmatprep.subr.mxu0 0.0
      %377 = vmatpush1.msra.mxu0 0.0
      %378 = vmatprep.subr.mxu0 0.0
      %379 = vmatpush1.msra.mxu0 0.0
      %380 = vmatprep.subr.mxu0 0.0
      %381 = vmatpush1.msra.mxu0 0.0
      %382 = vmatprep.subr.mxu0 0.0
      %383 = vmatpush1.msra.mxu0 0.0
      %384 = vmatprep.subr.mxu0 0.0
      %385 = vmatpush1.msra.mxu0 0.0
      %386 = vmatprep.subr.mxu0 0.0
      %387 = vmatpush1.msra.mxu0 0.0
      %388 = vmatprep.subr.mxu0 0.0
      %389 = vmatpush1.msra.mxu0 0.0
      %390 = vmatprep.subr.mxu0 0.0
      %391 = vmatpush1.msra.mxu0 0.0
      %392 = vmatprep.subr.mxu0 0.0
      %393 = vmatpush1.msra.mxu0 0.0
      %394 = vmatprep.subr.mxu0 0.0
      %395 = vmatpush1.msra.mxu0 0.0
      %396 = vmatprep.subr.mxu0 0.0
      %397 = vmatpush1.msra.mxu0 0.0
      %398 = vmatprep.subr.mxu0 0.0
      %399 = vmatpush1.msra.mxu0 0.0
      %400 = vmatprep.subr.mxu0 0.0
      %401 = vmatpush1.msra.mxu0 0.0
      %402 = vmatprep.subr.mxu0 0.0
      %403 = vmatpush1.msra.mxu0 0.0
      %404 = vmatprep.subr.mxu0 0.0
      %405 = vmatpush1.msra.mxu0 0.0
      %406 = vmatprep.subr.mxu0 0.0
      %407 = vmatpush1.msra.mxu0 0.0
      %408 = vmatprep.subr.mxu0 0.0
      %409 = vmatpush1.msra.mxu0 0.0
      %410 = vmatprep.subr.mxu0 0.0
      %411 = vmatpush1.msra.mxu0 0.0
      %412 = vmatprep.subr.mxu0 0.0
      %413 = vmatpush1.msra.mxu0 0.0
      %414 = vmatprep.subr.mxu0 0.0
      %415 = vmatpush1.msra.mxu0 0.0
      %416 = vmatprep.mubr.f32.mxu0 0.0
      %417 = vmatmul.mubr.f32.gmra.mrb[0].mxu0 %v138
      %v418 = vpop.f32.mrb[0].mxu0
      %v419 = vadd.f32 %v349, %v418
      %v420 = vpop.f32.mrb[0].mxu0
      %421 = vdwg.mxu0
    $region46: #{tpu_custom_call.1} parent=1 // loop_footer
      %s131 = sadd.s32 1, %s127
    $region47: #{tpu_custom_call.1} parent=1 // loop_footer_branch
      %126 = sbr.rel target = $region43
    $region48: #{tpu_custom_call.1} parent=1 // loop_exit
      _
    %s422 = scalar_lea.vmem [#allocation5], 8
    %v423 = vld [vmem:[%s422] sm:$0xff]
    %425 = vset.pattern.permute.xlu0 127
    %426 = vperm.xlu0 %425, %v423
    %v427 = vpop.permute.xlu0 %426
    %v429 = vmul.f32 %v427, %v123
    loop: start=0, step=1, limit=2
    $region49: #{tpu_custom_call.1} parent=1 // loop_pre_header
      _
    $region50: #{tpu_custom_call.1} parent=1 // loop_header
      %s431 = sphi 0, %s435
      %p432 = scmp.ge.s32.totalorder %s431, 2
      %v436 = vphi %v429, %v723
    $region51: #{tpu_custom_call.1} parent=1 // loop_header_branch
      %434 = sbr.rel (%p432) target = $region55
    $region52: #{tpu_custom_call.1} parent=1 // loop_body
      %s437 = ssub.s32 1, %s431
      %s438 = smul.u32 %s437, 8
      %s439 = scalar_lea.vmem [#allocation5], %s438
      %v440 = vld [vmem:[%s439] sm:$0xff]
      %vm441 = vcmask 64512
      %v443 = vsel %vm441, %v436, 0
      %445 = vmatprep.subr.mxu0 0.0
      %446 = vmatpush1.msra.mxu0 %v94
      %447 = vmatprep.subr.mxu0 0.0
      %448 = vmatpush1.msra.mxu0 0.0
      %449 = vmatprep.subr.mxu0 0.0
      %450 = vmatpush1.msra.mxu0 0.0
      %451 = vmatprep.subr.mxu0 0.0
      %452 = vmatpush1.msra.mxu0 0.0
      %453 = vmatprep.subr.mxu0 0.0
      %454 = vmatpush1.msra.mxu0 0.0
      %455 = vmatprep.subr.mxu0 0.0
      %456 = vmatpush1.msra.mxu0 0.0
      %457 = vmatprep.subr.mxu0 0.0
      %458 = vmatpush1.msra.mxu0 0.0
      %459 = vmatprep.subr.mxu0 0.0
      %460 = vmatpush1.msra.mxu0 0.0
      %461 = vmatprep.subr.mxu0 0.0
      %462 = vmatpush1.msra.mxu0 0.0
      %463 = vmatprep.subr.mxu0 0.0
      %464 = vmatpush1.msra.mxu0 0.0
      %465 = vmatprep.subr.mxu0 0.0
      %466 = vmatpush1.msra.mxu0 0.0
      %467 = vmatprep.subr.mxu0 0.0
      %468 = vmatpush1.msra.mxu0 0.0
      %469 = vmatprep.subr.mxu0 0.0
      %470 = vmatpush1.msra.mxu0 0.0
      %471 = vmatprep.subr.mxu0 0.0
      %472 = vmatpush1.msra.mxu0 0.0
      %473 = vmatprep.subr.mxu0 0.0
      %474 = vmatpush1.msra.mxu0 0.0
      %475 = vmatprep.subr.mxu0 0.0
      %476 = vmatpush1.msra.mxu0 0.0
      %477 = vmatprep.subr.mxu0 0.0
      %478 = vmatpush1.msra.mxu0 0.0
      %479 = vmatprep.subr.mxu0 0.0
      %480 = vmatpush1.msra.mxu0 0.0
      %481 = vmatprep.subr.mxu0 0.0
      %482 = vmatpush1.msra.mxu0 0.0
      %483 = vmatprep.subr.mxu0 0.0
      %484 = vmatpush1.msra.mxu0 0.0
      %485 = vmatprep.subr.mxu0 0.0
      %486 = vmatpush1.msra.mxu0 0.0
      %487 = vmatprep.subr.mxu0 0.0
      %488 = vmatpush1.msra.mxu0 0.0
      %489 = vmatprep.subr.mxu0 0.0
      %490 = vmatpush1.msra.mxu0 0.0
      %491 = vmatprep.subr.mxu0 0.0
      %492 = vmatpush1.msra.mxu0 0.0
      %493 = vmatprep.subr.mxu0 0.0
      %494 = vmatpush1.msra.mxu0 0.0
      %495 = vmatprep.subr.mxu0 0.0
      %496 = vmatpush1.msra.mxu0 0.0
      %497 = vmatprep.subr.mxu0 0.0
      %498 = vmatpush1.msra.mxu0 0.0
      %499 = vmatprep.subr.mxu0 0.0
      %500 = vmatpush1.msra.mxu0 0.0
      %501 = vmatprep.subr.mxu0 0.0
      %502 = vmatpush1.msra.mxu0 0.0
      %503 = vmatprep.subr.mxu0 0.0
      %504 = vmatpush1.msra.mxu0 0.0
      %505 = vmatprep.subr.mxu0 0.0
      %506 = vmatpush1.msra.mxu0 0.0
      %507 = vmatprep.subr.mxu0 0.0
      %508 = vmatpush1.msra.mxu0 0.0
      %509 = vmatprep.mubr.f32.mxu0 0.0
      %510 = vmatmul.mubr.f32.gmra.mrb[0].mxu0 %v443
      %v511 = vpop.f32.mrb[0].mxu0
      %v512 = vadd.f32 0.0, %v511
      %v513 = vpop.f32.mrb[0].mxu0
      %514 = vdwg.mxu0
      %515 = vmatprep.subr.mxu0 0.0
      %516 = vmatpush1.msra.mxu0 %v78
      %517 = vmatprep.subr.mxu0 0.0
      %518 = vmatpush1.msra.mxu0 %v79
      %519 = vmatprep.subr.mxu0 0.0
      %520 = vmatpush1.msra.mxu0 %v80
      %521 = vmatprep.subr.mxu0 0.0
      %522 = vmatpush1.msra.mxu0 %v81
      %523 = vmatprep.subr.mxu0 0.0
      %524 = vmatpush1.msra.mxu0 %v82
      %525 = vmatprep.subr.mxu0 0.0
      %526 = vmatpush1.msra.mxu0 %v83
      %527 = vmatprep.subr.mxu0 0.0
      %528 = vmatpush1.msra.mxu0 %v84
      %529 = vmatprep.subr.mxu0 0.0
      %530 = vmatpush1.msra.mxu0 %v85
      %531 = vmatprep.subr.mxu0 0.0
      %532 = vmatpush1.msra.mxu0 %v86
      %533 = vmatprep.subr.mxu0 0.0
      %534 = vmatpush1.msra.mxu0 %v87
      %535 = vmatprep.subr.mxu0 0.0
      %536 = vmatpush1.msra.mxu0 %v88
      %537 = vmatprep.subr.mxu0 0.0
      %538 = vmatpush1.msra.mxu0 %v89
      %539 = vmatprep.subr.mxu0 0.0
      %540 = vmatpush1.msra.mxu0 %v90
      %541 = vmatprep.subr.mxu0 0.0
      %542 = vmatpush1.msra.mxu0 %v91
      %543 = vmatprep.subr.mxu0 0.0
      %544 = vmatpush1.msra.mxu0 %v92
      %545 = vmatprep.subr.mxu0 0.0
      %546 = vmatpush1.msra.mxu0 %v93
      %547 = vmatprep.subr.mxu0 0.0
      %548 = vmatpush1.msra.mxu0 0.0
      %549 = vmatprep.subr.mxu0 0.0
      %550 = vmatpush1.msra.mxu0 0.0
      %551 = vmatprep.subr.mxu0 0.0
      %552 = vmatpush1.msra.mxu0 0.0
      %553 = vmatprep.subr.mxu0 0.0
      %554 = vmatpush1.msra.mxu0 0.0
      %555 = vmatprep.subr.mxu0 0.0
      %556 = vmatpush1.msra.mxu0 0.0
      %557 = vmatprep.subr.mxu0 0.0
      %558 = vmatpush1.msra.mxu0 0.0
      %559 = vmatprep.subr.mxu0 0.0
      %560 = vmatpush1.msra.mxu0 0.0
      %561 = vmatprep.subr.mxu0 0.0
      %562 = vmatpush1.msra.mxu0 0.0
      %563 = vmatprep.subr.mxu0 0.0
      %564 = vmatpush1.msra.mxu0 0.0
      %565 = vmatprep.subr.mxu0 0.0
      %566 = vmatpush1.msra.mxu0 0.0
      %567 = vmatprep.subr.mxu0 0.0
      %568 = vmatpush1.msra.mxu0 0.0
      %569 = vmatprep.subr.mxu0 0.0
      %570 = vmatpush1.msra.mxu0 0.0
      %571 = vmatprep.subr.mxu0 0.0
      %572 = vmatpush1.msra.mxu0 0.0
      %573 = vmatprep.subr.mxu0 0.0
      %574 = vmatpush1.msra.mxu0 0.0
      %575 = vmatprep.subr.mxu0 0.0
      %576 = vmatpush1.msra.mxu0 0.0
      %577 = vmatprep.subr.mxu0 0.0
      %578 = vmatpush1.msra.mxu0 0.0
      %579 = vmatprep.mubr.f32.mxu0 0.0
      %580 = vmatmul.mubr.f32.gmra.mrb[0].mxu0 %v440
      %v581 = vpop.f32.mrb[0].mxu0
      %v582 = vadd.f32 %v512, %v581
      %v583 = vpop.f32.mrb[0].mxu0
      %584 = vdwg.mxu0
      %585 = vst [vmem:[%s439] sm:$0xff] %v582
      %586 = vmatprep.subr.mxu0 0.0
      %587 = vmatpush1.msra.mxu0 %v95
      %588 = vmatprep.subr.mxu0 0.0
      %589 = vmatpush1.msra.mxu0 %v96
      %590 = vmatprep.subr.mxu0 0.0
      %591 = vmatpush1.msra.mxu0 %v97
      %592 = vmatprep.subr.mxu0 0.0
      %593 = vmatpush1.msra.mxu0 %v98
      %594 = vmatprep.subr.mxu0 0.0
      %595 = vmatpush1.msra.mxu0 %v99
      %596 = vmatprep.subr.mxu0 0.0
      %597 = vmatpush1.msra.mxu0 %v100
      %598 = vmatprep.subr.mxu0 0.0
      %599 = vmatpush1.msra.mxu0 %v101
      %600 = vmatprep.subr.mxu0 0.0
      %601 = vmatpush1.msra.mxu0 %v102
      %602 = vmatprep.subr.mxu0 0.0
      %603 = vmatpush1.msra.mxu0 %v103
      %604 = vmatprep.subr.mxu0 0.0
      %605 = vmatpush1.msra.mxu0 %v104
      %606 = vmatprep.subr.mxu0 0.0
      %607 = vmatpush1.msra.mxu0 %v105
      %608 = vmatprep.subr.mxu0 0.0
      %609 = vmatpush1.msra.mxu0 %v106
      %610 = vmatprep.subr.mxu0 0.0
      %611 = vmatpush1.msra.mxu0 %v107
      %612 = vmatprep.subr.mxu0 0.0
      %613 = vmatpush1.msra.mxu0 %v108
      %614 = vmatprep.subr.mxu0 0.0
      %615 = vmatpush1.msra.mxu0 %v109
      %616 = vmatprep.subr.mxu0 0.0
      %617 = vmatpush1.msra.mxu0 %v110
      %618 = vmatprep.subr.mxu0 0.0
      %619 = vmatpush1.msra.mxu0 0.0
      %620 = vmatprep.subr.mxu0 0.0
      %621 = vmatpush1.msra.mxu0 0.0
      %622 = vmatprep.subr.mxu0 0.0
      %623 = vmatpush1.msra.mxu0 0.0
      %624 = vmatprep.subr.mxu0 0.0
      %625 = vmatpush1.msra.mxu0 0.0
      %626 = vmatprep.subr.mxu0 0.0
      %627 = vmatpush1.msra.mxu0 0.0
      %628 = vmatprep.subr.mxu0 0.0
      %629 = vmatpush1.msra.mxu0 0.0
      %630 = vmatprep.subr.mxu0 0.0
      %631 = vmatpush1.msra.mxu0 0.0
      %632 = vmatprep.subr.mxu0 0.0
      %633 = vmatpush1.msra.mxu0 0.0
      %634 = vmatprep.subr.mxu0 0.0
      %635 = vmatpush1.msra.mxu0 0.0
      %636 = vmatprep.subr.mxu0 0.0
      %637 = vmatpush1.msra.mxu0 0.0
      %638 = vmatprep.subr.mxu0 0.0
      %639 = vmatpush1.msra.mxu0 0.0
      %640 = vmatprep.subr.mxu0 0.0
      %641 = vmatpush1.msra.mxu0 0.0
      %642 = vmatprep.subr.mxu0 0.0
      %643 = vmatpush1.msra.mxu0 0.0
      %644 = vmatprep.subr.mxu0 0.0
      %645 = vmatpush1.msra.mxu0 0.0
      %646 = vmatprep.subr.mxu0 0.0
      %647 = vmatpush1.msra.mxu0 0.0
      %648 = vmatprep.subr.mxu0 0.0
      %649 = vmatpush1.msra.mxu0 0.0
      %650 = vmatprep.mubr.f32.mxu0 0.0
      %651 = vmatmul.mubr.f32.gmra.mrb[0].mxu0 %v440
      %v652 = vpop.f32.mrb[0].mxu0
      %v653 = vadd.f32 0.0, %v652
      %v654 = vpop.f32.mrb[0].mxu0
      %655 = vdwg.mxu0
      %656 = vmatprep.subr.mxu0 0.0
      %657 = vmatpush1.msra.mxu0 %v111
      %658 = vmatprep.subr.mxu0 0.0
      %659 = vmatpush1.msra.mxu0 0.0
      %660 = vmatprep.subr.mxu0 0.0
      %661 = vmatpush1.msra.mxu0 0.0
      %662 = vmatprep.subr.mxu0 0.0
      %663 = vmatpush1.msra.mxu0 0.0
      %664 = vmatprep.subr.mxu0 0.0
      %665 = vmatpush1.msra.mxu0 0.0
      %666 = vmatprep.subr.mxu0 0.0
      %667 = vmatpush1.msra.mxu0 0.0
      %668 = vmatprep.subr.mxu0 0.0
      %669 = vmatpush1.msra.mxu0 0.0
      %670 = vmatprep.subr.mxu0 0.0
      %671 = vmatpush1.msra.mxu0 0.0
      %672 = vmatprep.subr.mxu0 0.0
      %673 = vmatpush1.msra.mxu0 0.0
      %674 = vmatprep.subr.mxu0 0.0
      %675 = vmatpush1.msra.mxu0 0.0
      %676 = vmatprep.subr.mxu0 0.0
      %677 = vmatpush1.msra.mxu0 0.0
      %678 = vmatprep.subr.mxu0 0.0
      %679 = vmatpush1.msra.mxu0 0.0
      %680 = vmatprep.subr.mxu0 0.0
      %681 = vmatpush1.msra.mxu0 0.0
      %682 = vmatprep.subr.mxu0 0.0
      %683 = vmatpush1.msra.mxu0 0.0
      %684 = vmatprep.subr.mxu0 0.0
      %685 = vmatpush1.msra.mxu0 0.0
      %686 = vmatprep.subr.mxu0 0.0
      %687 = vmatpush1.msra.mxu0 0.0
      %688 = vmatprep.subr.mxu0 0.0
      %689 = vmatpush1.msra.mxu0 0.0
      %690 = vmatprep.subr.mxu0 0.0
      %691 = vmatpush1.msra.mxu0 0.0
      %692 = vmatprep.subr.mxu0 0.0
      %693 = vmatpush1.msra.mxu0 0.0
      %694 = vmatprep.subr.mxu0 0.0
      %695 = vmatpush1.msra.mxu0 0.0
      %696 = vmatprep.subr.mxu0 0.0
      %697 = vmatpush1.msra.mxu0 0.0
      %698 = vmatprep.subr.mxu0 0.0
      %699 = vmatpush1.msra.mxu0 0.0
      %700 = vmatprep.subr.mxu0 0.0
      %701 = vmatpush1.msra.mxu0 0.0
      %702 = vmatprep.subr.mxu0 0.0
      %703 = vmatpush1.msra.mxu0 0.0
      %704 = vmatprep.subr.mxu0 0.0
      %705 = vmatpush1.msra.mxu0 0.0
      %706 = vmatprep.subr.mxu0 0.0
      %707 = vmatpush1.msra.mxu0 0.0
      %708 = vmatprep.subr.mxu0 0.0
      %709 = vmatpush1.msra.mxu0 0.0
      %710 = vmatprep.subr.mxu0 0.0
      %711 = vmatpush1.msra.mxu0 0.0
      %712 = vmatprep.subr.mxu0 0.0
      %713 = vmatpush1.msra.mxu0 0.0
      %714 = vmatprep.subr.mxu0 0.0
      %715 = vmatpush1.msra.mxu0 0.0
      %716 = vmatprep.subr.mxu0 0.0
      %717 = vmatpush1.msra.mxu0 0.0
      %718 = vmatprep.subr.mxu0 0.0
      %719 = vmatpush1.msra.mxu0 0.0
      %720 = vmatprep.mubr.f32.mxu0 0.0
      %721 = vmatmul.mubr.f32.gmra.mrb[0].mxu0 %v443
      %v722 = vpop.f32.mrb[0].mxu0
      %v723 = vadd.f32 %v653, %v722
      %v724 = vpop.f32.mrb[0].mxu0
      %725 = vdwg.mxu0
    $region53: #{tpu_custom_call.1} parent=1 // loop_footer
      %s435 = sadd.s32 1, %s431
    $region54: #{tpu_custom_call.1} parent=1 // loop_footer_branch
      %430 = sbr.rel target = $region50
    $region55: #{tpu_custom_call.1} parent=1 // loop_exit
      _
    // Predicated region
    $region56: #{tpu_custom_call.1} parent=1 // pred_check
      _
    $region57: #{tpu_custom_call.1} parent=1 // pred_check_branch
      %727 = sbr.rel (0) target = $region59
    $region58: #{tpu_custom_call.1} parent=1 // pred_region
      %s729 = ssub.s32 256, 256
      %730 = vsyncadd [#allocation4], %s729
      %s731 = sshll.u32 [#allocation5], 4
      %s732 = int_to_ptr.vmem [resolvable:$true] %s731
      %737 = dma.vmem_to_hbm [thread:$0]  %s732, 256, %s9, [#allocation4], 128, 128, 8
    $region59: #{tpu_custom_call.1} parent=1 // pred_fallthru
      _
    // Predicated region
    $region60: #{tpu_custom_call.1} parent=1 // pred_check
      _
    $region61: #{tpu_custom_call.1} parent=1 // pred_check_branch
      %739 = sbr.rel (0) target = $region63
    $region62: #{tpu_custom_call.1} parent=1 // pred_region
      %740 = dma.done [#allocation4], 256
    $region63: #{tpu_custom_call.1} parent=1 // pred_fallthru
      _
    %741 = vsyncpa [#allocation3], 1
    %742 = vsyncpa [#allocation4], 1

</llo_original>
